<compile_context>
chip_gen: v6e
topology: v6e:2x2x1
jax: 0.10.0
libtpu: 0.0.40
codegen_flags: <defaults>
</compile_context>

<pallas_src>
import functools

import numpy as np
import jax
import jax.numpy as jnp
from jax import lax
from jax.experimental import pallas as pl
from jax.experimental.pallas import tpu as pltpu


_VMEM_BUDGET = 8 * 1024 * 1024          # double-buffered block footprint cap
_VMEM_LIMIT = 32 * 1024 * 1024          # scoped-VMEM limit (safe on v5e/v6e/v7x)


def _compiler_params():
    return pltpu.CompilerParams(
        dimension_semantics=("parallel", "parallel"),
        vmem_limit_bytes=_VMEM_LIMIT)


def _choose_d_tile(d, row_bytes, batch, *, budget=_VMEM_BUDGET, unit=8):
    """Pick a D-axis tile.

    Prefers the full extent (always layout-legal for any dtype), otherwise the
    largest multiple of `unit` dividing d, such that the double-buffered block
    footprint 2*td*row_bytes stays under `budget`.  Tries to keep
    batch*ceil(d/td) >= 2 so both v7x TensorCores get work.
    """
    cap = max(1, budget // max(1, 2 * row_bytes))
    cands = set()
    if d <= cap:
        cands.add(d)
    for t in range(unit, min(d, cap) + 1, unit):
        if d % t == 0:
            cands.add(t)
    if not cands:
        # TODO(synk): no clean divisor fits the budget; fall back to a
        # unit-multiple tile and let Pallas mask the tail block (cdiv grid).
        return max(unit, min(d, (cap // unit) * unit or unit))
    cands = sorted(cands)
    td = cands[-1]
    if batch * ((d + td - 1) // td) < 2 and len(cands) > 1:
        td = cands[-2]
    return td


# ----------------------------------------------------------------------------
# shared in-register 1x1x1 seg head with optional channel substitution
# ----------------------------------------------------------------------------
def _weighted_head(xv, w, bias, subs):
    """xv: (C, td, hw) tile loaded once.  subs: {channel -> (td, hw) value}.

    Returns (CO, td, hw) = pointwise conv (weights w: C x CO, bias: CO)."""
    c_in = len(w)
    c_out = len(bias)
    outs = []
    for c in range(c_out):
        acc = jnp.full(xv.shape[1:], bias[c], jnp.float32)
        for k in range(c_in):
            src = subs[k] if k in subs else xv[k]
            acc = acc + src * w[k][c]
        outs.append(acc)
    return jnp.stack(outs, axis=0)       # single full-block store at the call site


# ----------------------------------------------------------------------------
# Kernel 1: plain seg head (used when n_clicks == 0 / by orig_network.__call__)
# ----------------------------------------------------------------------------
def _seg_head_kernel(x_ref, o_ref, *, w, bias):
    xv = x_ref[0]                         # (C, td, hw): one load of the tile
    o_ref[0] = _weighted_head(xv, w, bias, {})


def pointwise_seg_head(x, w_np, b_np):
    B, C, D, H, W = x.shape
    w_np = np.asarray(w_np, dtype=np.float32)
    b_np = np.asarray(b_np, dtype=np.float32)
    CO = int(w_np.shape[1])
    hw = H * W
    x4 = x.reshape(B, C, D, hw)
    row_bytes = (C + CO) * hw * 4
    td = _choose_d_tile(D, row_bytes, B, unit=8)
    kernel = functools.partial(
        _seg_head_kernel,
        w=tuple(tuple(float(v) for v in row) for row in w_np),
        bias=tuple(float(v) for v in b_np))
    out = pl.pallas_call(
        kernel,
        out_shape=jax.ShapeDtypeStruct((B, CO, D, hw), jnp.float32),
        grid_spec=pltpu.PrefetchScalarGridSpec(
            num_scalar_prefetch=0,
            grid=(B, pl.cdiv(D, td)),
            in_specs=[pl.BlockSpec((1, C, td, hw), lambda b, d: (b, 0, d, 0))],
            out_specs=pl.BlockSpec((1, CO, td, hw), lambda b, d: (b, 0, d, 0)),
        ),
        compiler_params=_compiler_params(),
    )(x4)
    return out.reshape(B, CO, D, H, W)


# ----------------------------------------------------------------------------
# Kernel 2: first pass fused with gts compare -> int8 "code" volume
#           bit0 = mistake voxel ((gts>0) != (seg diff > 0)),  bit1 = gts>0
# ----------------------------------------------------------------------------
def _mask_code_kernel(x_ref, g_ref, code_ref, *, dw, db):
    xv = x_ref[0]                                  # (C, td, hw)
    acc = jnp.full(xv.shape[1:], db, jnp.float32)
    for k in range(len(dw)):
        acc = acc + xv[k] * dw[k]
    seg_pos = acc > 0.0                            # diff(seg, dim=1) > 0
    gt_pos = g_ref[0] > 0.0                        # (td, hw)
    mistakes = seg_pos != gt_pos
    code = mistakes.astype(jnp.int32) + 2 * gt_pos.astype(jnp.int32)
    code_ref[0] = code.astype(jnp.int8)


def mistakes_code_volume(x, gts, dw_np, db):
    B, C, D, H, W = x.shape
    hw = H * W
    x4 = x.reshape(B, C, D, hw)
    g3 = gts.reshape(B, D, hw)
    row_bytes = (C + 1) * hw * 4 + hw
    # unit=32 keeps the int8 output block's second-minor dim layout friendly
    td = _choose_d_tile(D, row_bytes, B, unit=32)
    kernel = functools.partial(
        _mask_code_kernel,
        dw=tuple(float(v) for v in np.asarray(dw_np)), db=float(db))
    code = pl.pallas_call(
        kernel,
        out_shape=jax.ShapeDtypeStruct((B, D, hw), jnp.int8),
        grid_spec=pltpu.PrefetchScalarGridSpec(
            num_scalar_prefetch=0,
            grid=(B, pl.cdiv(D, td)),
            in_specs=[pl.BlockSpec((1, C, td, hw), lambda b, d: (b, 0, d, 0)),
                      pl.BlockSpec((1, td, hw), lambda b, d: (b, d, 0))],
            out_specs=pl.BlockSpec((1, td, hw), lambda b, d: (b, d, 0)),
        ),
        compiler_params=_compiler_params(),
    )(x4, g3)
    return code                                    # (B, D, H*W) int8


# ----------------------------------------------------------------------------
# Kernel 3: fused final pass = mask recompute + click spheres + channel
#           substitution + seg head, all in-register from the ORIGINAL x.
# ----------------------------------------------------------------------------
def _fused_clicks_seg_kernel(cp_ref, x_ref, o_ref, *, w, bias, dw, db,
                             n_clicks, batch, width, radius):
    b_idx = pl.program_id(0)
    d_blk = pl.program_id(1)
    xv = x_ref[0]                                  # (C, td, hw) ORIGINAL x tile
    td, hw = xv.shape[1], xv.shape[2]

    # previous-seg mask from ORIGINAL channels (same formula as pass 1)
    acc = jnp.full((td, hw), db, jnp.float32)
    for k in range(len(dw)):
        acc = acc + xv[k] * dw[k]
    mask_f = (acc > 0.0).astype(jnp.float32)

    # click spheres: integer squared-distance test, bool OR accumulation
    z = lax.broadcasted_iota(jnp.int32, (td, hw), 0) + d_blk * td
    lane = lax.broadcasted_iota(jnp.int32, (td, hw), 1)
    y = lane // width
    xc = lane - y * width
    r2 = radius * radius
    pos_any = jnp.zeros((td, hw), jnp.bool_)
    neg_any = jnp.zeros((td, hw), jnp.bool_)
    for k in range(n_clicks):                      # static unroll (n_clicks <= 5)
        row = (k * batch + b_idx) * 4
        cz = cp_ref[row + 0]
        cy = cp_ref[row + 1]
        cx = cp_ref[row + 2]
        is_pos = cp_ref[row + 3] > 0
        dz = z - cz
        dy = y - cy
        dx = xc - cx
        inside = (dz * dz + dy * dy + dx * dx) < r2
        pos_any = jnp.logical_or(pos_any, jnp.logical_and(inside, is_pos))
        neg_any = jnp.logical_or(neg_any,
                                 jnp.logical_and(inside, jnp.logical_not(is_pos)))
    pos_f = pos_any.astype(jnp.float32)
    neg_f = neg_any.astype(jnp.float32)

    # channel substitution happens in-register; x is never rebuilt in HBM.
    c_in = len(w)
    subs = {}
    subs[1] = mask_f                               # x[:, 1]  = prev-seg mask
    subs[c_in - 4] = pos_f                         # x[:, -4] = positive clicks
    subs[c_in - 3] = neg_f                         # x[:, -3] = negative clicks
    o_ref[0] = _weighted_head(xv, w, bias, subs)


def fused_click_seg_head(x, cp_flat, n_clicks, radius, w_np, b_np):
    B, C, D, H, W = x.shape
    w_np = np.asarray(w_np, dtype=np.float32)
    b_np = np.asarray(b_np, dtype=np.float32)
    CO = int(w_np.shape[1])
    assert CO == 2, "diff(seg, dim=1) must yield a single channel"
    hw = H * W
    x4 = x.reshape(B, C, D, hw)
    row_bytes = (C + CO) * hw * 4
    td = _choose_d_tile(D, row_bytes, B, unit=8)
    kernel = functools.partial(
        _fused_clicks_seg_kernel,
        w=tuple(tuple(float(v) for v in row) for row in w_np),
        bias=tuple(float(v) for v in b_np),
        dw=tuple(float(v) for v in (w_np[:, 1] - w_np[:, 0])),
        db=float(b_np[1] - b_np[0]),
        n_clicks=int(n_clicks), batch=int(B), width=int(W), radius=int(radius))
    out = pl.pallas_call(
        kernel,
        out_shape=jax.ShapeDtypeStruct((B, CO, D, hw), jnp.float32),
        grid_spec=pltpu.PrefetchScalarGridSpec(
            num_scalar_prefetch=1,                 # flat click table -> SMEM
            grid=(B, pl.cdiv(D, td)),
            in_specs=[pl.BlockSpec((1, C, td, hw),
                                   lambda b, d, cp: (b, 0, d, 0))],
            out_specs=pl.BlockSpec((1, CO, td, hw),
                                   lambda b, d, cp: (b, 0, d, 0)),
        ),
        compiler_params=_compiler_params(),
    )(cp_flat, x4)
    return out.reshape(B, CO, D, H, W)


# ----------------------------------------------------------------------------
# Synthetic orig_network stand-in (deterministic weights, deep-supervision list)
# ----------------------------------------------------------------------------
class TinySegNetwork:
    """Stand-in for the wrapped nnU-Net: a 1x1x1 pointwise conv seg head
    (in_channels -> 2) implemented as a Pallas kernel (weights folded in).
    # TODO(synk): full nnU-Net encoder/decoder hierarchy not reproduced."""

    def __init__(self, in_channels=7, out_channels=2, key=None):
        if key is None:
            key = jax.random.PRNGKey(42)
        kw, kb = jax.random.split(key)
        self.weight = 0.5 * jax.random.normal(kw, (in_channels, out_channels),
                                              jnp.float32)
        self.bias = 0.1 * jax.random.normal(kb, (out_channels,), jnp.float32)
        self._w_np = np.asarray(jax.device_get(self.weight), dtype=np.float32)
        self._b_np = np.asarray(jax.device_get(self.bias), dtype=np.float32)
        self.decoder = None

    def __call__(self, x, *args, **kwargs):
        return [pointwise_seg_head(x, self._w_np, self._b_np)]

    # --- fused interactive-click API used by the wrapper ---------------------
    def mistakes_code(self, x, gts):
        dw = self._w_np[:, 1] - self._w_np[:, 0]
        db = float(self._b_np[1] - self._b_np[0])
        return mistakes_code_volume(x, gts, dw, db)

    def fused_forward_with_clicks(self, x, cp_flat, n_clicks, radius,
                                  *args, **kwargs):
        return [fused_click_seg_head(x, cp_flat, n_clicks, radius,
                                     self._w_np, self._b_np)]


# ----------------------------------------------------------------------------
# The wrapper (forward semantics of ModelPrevSegAndClickWrapper)
# ----------------------------------------------------------------------------
class ModelPrevSegAndClickWrapper:
    def __init__(self, orig_network, force_n_clicks=None):
        self.orig_network = orig_network
        self.decoder = getattr(orig_network, "decoder", None)
        self.click_radius = 4
        # force_n_clicks only guarantees a code path in the demo; when None,
        # n_clicks is sampled exactly like the reference module.
        self.force_n_clicks = force_n_clicks

    def forward(self, *args, **kwargs):
        x_and_gts = args[0]
        x = x_and_gts[:, :-1]
        gts = x_and_gts[:, -1:]

        if self.force_n_clicks is None:
            n_clicks = np.random.choice(
                [0, 1, 2, 3, 4, 5], size=1,
                p=[0.75, 0.05, 0.05, 0.05, 0.05, 0.05]).item()
        else:
            n_clicks = int(self.force_n_clicks)

        if n_clicks == 0:
            return self.orig_network(x, *args[1:], **kwargs)

        B, C, D, H, W = x.shape

        fused_ok = (hasattr(self.orig_network, "mistakes_code")
                    and hasattr(self.orig_network, "fused_forward_with_clicks"))
        if not fused_ok:
            return self._unfused_forward(x, gts, n_clicks, args[1:], kwargs)

        # -- pass 1 (Pallas): seg-head diff + gts compare, one int8 volume ----
        code = self.orig_network.mistakes_code(x, gts)
        # single D2H sync of ONE bool-sized volume
        code_np = np.asarray(jax.device_get(code)).reshape(B, 1, D, H, W)
        mistakes_np = (code_np & 1) != 0
        gts_pos_np = (code_np & 2) != 0

        # -- host-side stochastic click selection (same RNG order as reference;
        #    the mistakes mask is constant across the reference's click loop) --
        click_rows = []
        mistakes_coords = np.argwhere(mistakes_np)
        if len(mistakes_coords) > 0:
            for _ in range(n_clicks):
                for i_image in range(B):
                    this_coords = mistakes_coords[
                        mistakes_coords[:, 0] == i_image]
                    if len(this_coords) > 0:
                        i_wanted = np.random.choice(len(this_coords))
                        wanted = this_coords[i_wanted]
                        positive = bool(gts_pos_np[tuple(wanted)])
                    else:
                        wanted = mistakes_coords[0]
                        positive = bool(gts_pos_np[tuple(wanted)])
                        wanted = wanted * 0 - self.click_radius * 2
                    click_rows.extend([int(wanted[2]), int(wanted[3]),
                                       int(wanted[4]), int(positive)])

        n_applied = (len(click_rows) // 4) // B if click_rows else 0
        if click_rows:
            cp_flat = jnp.asarray(np.asarray(click_rows, dtype=np.int32))
        else:
            cp_flat = jnp.zeros((4,), jnp.int32)   # dummy; never read

        # -- pass 2 (Pallas): channel substitution + click spheres + seg head,
        #    all fused into ONE kernel over the ORIGINAL x -----------------
        return self.orig_network.fused_forward_with_clicks(
            x, cp_flat, n_applied, self.click_radius, *args[1:], **kwargs)

    # Unfused fallback for arbitrary wrapped networks (not exercised by the
    # demo network, which supplies the fused Pallas path above).
    def _unfused_forward(self, x, gts, n_clicks, extra_args, kwargs):
        # TODO(synk): this generic path materializes intermediates in HBM.
        B, C, D, H, W = x.shape
        seg = self.orig_network(x)[0]
        mask = ((seg[:, 1:2] - seg[:, 0:1]) > 0).astype(jnp.float32)
        gts_pos_np = np.asarray(jax.device_get(gts > 0))
        mistakes_np = gts_pos_np != np.asarray(jax.device_get(mask > 0))
        click_rows = []
        mistakes_coords = np.argwhere(mistakes_np)
        if len(mistakes_coords) > 0:
            for _ in range(n_clicks):
                for i_image in range(B):
                    this_coords = mistakes_coords[
                        mistakes_coords[:, 0] == i_image]
                    if len(this_coords) > 0:
                        wanted = this_coords[np.random.choice(len(this_coords))]
                        positive = bool(gts_pos_np[tuple(wanted)])
                    else:
                        wanted = mistakes_coords[0]
                        positive = bool(gts_pos_np[tuple(wanted)])
                        wanted = wanted * 0 - self.click_radius * 2
                    click_rows.append((int(wanted[2]), int(wanted[3]),
                                       int(wanted[4]), positive))
        zz = jnp.arange(D)[:, None, None]
        yy = jnp.arange(H)[None, :, None]
        xx = jnp.arange(W)[None, None, :]
        pos = jnp.zeros((B, 1, D, H, W), bool)
        neg = jnp.zeros((B, 1, D, H, W), bool)
        n_applied = (len(click_rows) // B) if click_rows else 0
        for k in range(n_applied):
            for b in range(B):
                cz, cy, cx, p = click_rows[k * B + b]
                sph = ((zz - cz) ** 2 + (yy - cy) ** 2 + (xx - cx) ** 2
                       < self.click_radius ** 2)
                if p:
                    pos = pos.at[b, 0].set(pos[b, 0] | sph)
                else:
                    neg = neg.at[b, 0].set(neg[b, 0] | sph)
        repl = {1: mask, C - 4: pos.astype(jnp.float32),
                C - 3: neg.astype(jnp.float32)}
        parts, prev = [], 0
        for c in sorted(repl):
            if c > prev:
                parts.append(x[:, prev:c])
            parts.append(repl[c])
            prev = c + 1
        if prev < C:
            parts.append(x[:, prev:C])
        x_new = jnp.concatenate(parts, axis=1)
        return self.orig_network(x_new, *extra_args, **kwargs)


# ----------------------------------------------------------------------------
if __name__ == "__main__":
    np.random.seed(0)
    key = jax.random.PRNGKey(0)
    B, C_IN, D, H, W = 2, 7, 16, 16, 16

    k1, k2 = jax.random.split(key)
    x_img = jax.random.normal(k1, (B, C_IN, D, H, W), jnp.float32)
    gts = (jax.random.uniform(k2, (B, 1, D, H, W)) > 0.7).astype(jnp.float32)
    x_and_gts = jnp.concatenate([x_img, gts], axis=1)   # [B, 8, D, H, W]

    net = TinySegNetwork(in_channels=C_IN, out_channels=2)

    # interactive-click path: forced 2 clicks so both fused Pallas kernels run
    wrapper = ModelPrevSegAndClickWrapper(net, force_n_clicks=2)
    out = wrapper.forward(x_and_gts)
    out0 = jax.block_until_ready(out[0])
    assert out0.shape == (B, 2, D, H, W)
    assert bool(jnp.all(jnp.isfinite(out0)))

    # no-click path: plain Pallas seg head, cross-checked against jnp einsum
    wrapper0 = ModelPrevSegAndClickWrapper(net, force_n_clicks=0)
    out_nc = jax.block_until_ready(wrapper0.forward(x_and_gts)[0])
    assert out_nc.shape == (B, 2, D, H, W)
    ref = jnp.einsum("bcdhw,co->bodhw", x_img, net.weight,
                     precision=jax.lax.Precision.HIGHEST)
    ref = ref + net.bias.reshape(1, 2, 1, 1, 1)
    np.testing.assert_allclose(np.asarray(out_nc), np.asarray(ref),
                               rtol=1e-4, atol=1e-4)

    print("KERNEL_OK")
</pallas_src>

<mosaic_0001>
module attributes {stable_mosaic.version = 11 : i64} {
  func.func @_mask_code_kernel(%arg0: i32, %arg1: i32, %arg2: memref<1x7x16x256xf32, #tpu.memory_space<vmem>>, %arg3: memref<1x16x256xf32, #tpu.memory_space<vmem>>, %arg4: memref<1x16x256xi8, #tpu.memory_space<vmem>>) attributes {dimension_semantics = [#tpu.dimension_semantics<parallel>, #tpu.dimension_semantics<parallel>], iteration_bounds = array<i64: 2, 1>, scalar_prefetch = 0 : i64, scratch_operands = 0 : i64, tpu.core_type = #tpu.core_type<tc>, window_params = [{transform_indices = @transform_0, window_bounds = array<i64: 1, 7, 16, 256>}, {transform_indices = @transform_1, window_bounds = array<i64: 1, 16, 256>}, {transform_indices = @transform_2, window_bounds = array<i64: 1, 16, 256>}]} {
    %c0 = arith.constant 0 : index
    %c0_0 = arith.constant 0 : index
    %c0_1 = arith.constant 0 : index
    %c0_2 = arith.constant 0 : index
    %0 = vector.load %arg2[%c0, %c0_0, %c0_1, %c0_2] : memref<1x7x16x256xf32, #tpu.memory_space<vmem>>, vector<1x7x16x256xf32>
    %1 = vector.shape_cast %0 : vector<1x7x16x256xf32> to vector<7x16x256xf32>
    %cst = arith.constant 0.0193280019 : f32
    %2 = vector.broadcast %cst : f32 to vector<16x256xf32>
    %3 = vector.extract_strided_slice %1 {offsets = [0, 0, 0], sizes = [1, 16, 256], strides = [1, 1, 1]} : vector<7x16x256xf32> to vector<1x16x256xf32>
    %4 = vector.shape_cast %3 : vector<1x16x256xf32> to vector<16x256xf32>
    %cst_3 = arith.constant -0.281134099 : f32
    %5 = vector.broadcast %cst_3 : f32 to vector<16x256xf32>
    %6 = arith.mulf %4, %5 : vector<16x256xf32>
    %7 = arith.addf %2, %6 : vector<16x256xf32>
    %8 = vector.extract_strided_slice %1 {offsets = [1, 0, 0], sizes = [1, 16, 256], strides = [1, 1, 1]} : vector<7x16x256xf32> to vector<1x16x256xf32>
    %9 = vector.shape_cast %8 : vector<1x16x256xf32> to vector<16x256xf32>
    %cst_4 = arith.constant -0.38535437 : f32
    %10 = vector.broadcast %cst_4 : f32 to vector<16x256xf32>
    %11 = arith.mulf %9, %10 : vector<16x256xf32>
    %12 = arith.addf %7, %11 : vector<16x256xf32>
    %13 = vector.extract_strided_slice %1 {offsets = [2, 0, 0], sizes = [1, 16, 256], strides = [1, 1, 1]} : vector<7x16x256xf32> to vector<1x16x256xf32>
    %14 = vector.shape_cast %13 : vector<1x16x256xf32> to vector<16x256xf32>
    %cst_5 = arith.constant 0.00497214496 : f32
    %15 = vector.broadcast %cst_5 : f32 to vector<16x256xf32>
    %16 = arith.mulf %14, %15 : vector<16x256xf32>
    %17 = arith.addf %12, %16 : vector<16x256xf32>
    %18 = vector.extract_strided_slice %1 {offsets = [3, 0, 0], sizes = [1, 16, 256], strides = [1, 1, 1]} : vector<7x16x256xf32> to vector<1x16x256xf32>
    %19 = vector.shape_cast %18 : vector<1x16x256xf32> to vector<16x256xf32>
    %cst_6 = arith.constant -0.691811501 : f32
    %20 = vector.broadcast %cst_6 : f32 to vector<16x256xf32>
    %21 = arith.mulf %19, %20 : vector<16x256xf32>
    %22 = arith.addf %17, %21 : vector<16x256xf32>
    %23 = vector.extract_strided_slice %1 {offsets = [4, 0, 0], sizes = [1, 16, 256], strides = [1, 1, 1]} : vector<7x16x256xf32> to vector<1x16x256xf32>
    %24 = vector.shape_cast %23 : vector<1x16x256xf32> to vector<16x256xf32>
    %cst_7 = arith.constant 1.31392562 : f32
    %25 = vector.broadcast %cst_7 : f32 to vector<16x256xf32>
    %26 = arith.mulf %24, %25 : vector<16x256xf32>
    %27 = arith.addf %22, %26 : vector<16x256xf32>
    %28 = vector.extract_strided_slice %1 {offsets = [5, 0, 0], sizes = [1, 16, 256], strides = [1, 1, 1]} : vector<7x16x256xf32> to vector<1x16x256xf32>
    %29 = vector.shape_cast %28 : vector<1x16x256xf32> to vector<16x256xf32>
    %cst_8 = arith.constant -0.107578747 : f32
    %30 = vector.broadcast %cst_8 : f32 to vector<16x256xf32>
    %31 = arith.mulf %29, %30 : vector<16x256xf32>
    %32 = arith.addf %27, %31 : vector<16x256xf32>
    %33 = vector.extract_strided_slice %1 {offsets = [6, 0, 0], sizes = [1, 16, 256], strides = [1, 1, 1]} : vector<7x16x256xf32> to vector<1x16x256xf32>
    %34 = vector.shape_cast %33 : vector<1x16x256xf32> to vector<16x256xf32>
    %cst_9 = arith.constant -0.730717599 : f32
    %35 = vector.broadcast %cst_9 : f32 to vector<16x256xf32>
    %36 = arith.mulf %34, %35 : vector<16x256xf32>
    %37 = arith.addf %32, %36 : vector<16x256xf32>
    %cst_10 = arith.constant 0.000000e+00 : f32
    %38 = vector.broadcast %cst_10 : f32 to vector<16x256xf32>
    %39 = arith.cmpf ogt, %37, %38 : vector<16x256xf32>
    %c0_11 = arith.constant 0 : index
    %c0_12 = arith.constant 0 : index
    %c0_13 = arith.constant 0 : index
    %40 = vector.load %arg3[%c0_11, %c0_12, %c0_13] : memref<1x16x256xf32, #tpu.memory_space<vmem>>, vector<1x16x256xf32>
    %41 = vector.shape_cast %40 : vector<1x16x256xf32> to vector<16x256xf32>
    %cst_14 = arith.constant 0.000000e+00 : f32
    %42 = vector.broadcast %cst_14 : f32 to vector<16x256xf32>
    %43 = arith.cmpf ogt, %41, %42 : vector<16x256xf32>
    %44 = arith.xori %39, %43 : vector<16x256xi1>
    %45 = arith.extui %44 : vector<16x256xi1> to vector<16x256xi32>
    %46 = arith.extui %43 : vector<16x256xi1> to vector<16x256xi32>
    %c2_i32 = arith.constant 2 : i32
    %47 = vector.broadcast %c2_i32 : i32 to vector<16x256xi32>
    %48 = arith.muli %47, %46 : vector<16x256xi32>
    %49 = arith.addi %45, %48 : vector<16x256xi32>
    %50 = arith.trunci %49 : vector<16x256xi32> to vector<16x256xi8>
    %c0_15 = arith.constant 0 : index
    %c0_16 = arith.constant 0 : index
    %c0_17 = arith.constant 0 : index
    %51 = vector.load %arg4[%c0_15, %c0_16, %c0_17] : memref<1x16x256xi8, #tpu.memory_space<vmem>>, vector<1x16x256xi8>
    %52 = vector.shape_cast %51 : vector<1x16x256xi8> to vector<16x256xi8>
    %53 = vector.shape_cast %50 : vector<16x256xi8> to vector<1x16x256xi8>
    tpu.vector_store %arg4[%c0_15, %c0_16, %c0_17], %53 {strides = array<i32>} : memref<1x16x256xi8, #tpu.memory_space<vmem>>, vector<1x16x256xi8>,
    return
  }
  func.func @transform_0(%arg0: i32, %arg1: i32) -> (i32, i32, i32, i32) {
    %c0_i32 = arith.constant 0 : i32
    %c0_i32_0 = arith.constant 0 : i32
    %c0_i32_1 = arith.constant 0 : i32
    return %arg0, %c0_i32, %arg1, %c0_i32_0 : i32, i32, i32, i32
  }
  func.func @transform_1(%arg0: i32, %arg1: i32) -> (i32, i32, i32) {
    %c0_i32 = arith.constant 0 : i32
    %c0_i32_0 = arith.constant 0 : i32
    return %arg0, %arg1, %c0_i32 : i32, i32, i32
  }
  func.func @transform_2(%arg0: i32, %arg1: i32) -> (i32, i32, i32) {
    %c0_i32 = arith.constant 0 : i32
    %c0_i32_0 = arith.constant 0 : i32
    return %arg0, %arg1, %c0_i32 : i32, i32, i32
  }
}

</mosaic_0001>

<llo_original>
// kernel: tpu_custom_call.1
$region0: #{tpu_custom_call.1}
  #allocation0 [shape = 'u32[]', space=smem, size = 0x4, offset = 0x4, fixed_abs, tag = 'smem constant byte address 0x4 - core index']
  #allocation1 [shape = 'u32[144,128]{1,0:T(1,128)}', space=vmem, size = 0x12000, scoped, tag = 'internal scratch']
  %s0 = inlined_call_operand.hbm [shape: f32[2,7,16,256], index: 0, kind: input, shape index: {}]
  %s1 = inlined_call_operand.hbm [shape: f32[2,16,256], index: 1, kind: input, shape index: {}]
  %s2 = inlined_call_operand.hbm [shape: s8[2,16,256], index: 2, kind: output, shape index: {}]
  %s3 = sld [smem:[#allocation0]]
  $region49: #{tpu_custom_call.1} parent=0
    _
  %s5 = ssub.s32 1, %s3
  %s6 = scalar_select 0, %s5, %s3
  $region1: #{tpu_custom_call.1} parent=0
    #allocation2 [shape = 'u8[229376]{0}', space=vmem, size = 0x38000, scoped, tag = 'input window, operand 0']
    #allocation3 [shape = 's32[2]{0}', space=sflag, size = 0x8, scoped, tag = 'scoped memory for tpu_custom_call.1']
    #allocation4 [shape = 's32[2]{0}', space=sflag, size = 0x8, scoped, tag = 'scoped memory for tpu_custom_call.1']
    #allocation5 [shape = 'u8[32768]{0}', space=vmem, size = 0x8000, scoped, tag = 'input window, operand 1']
    #allocation6 [shape = 's32[2]{0}', space=sflag, size = 0x8, scoped, tag = 'scoped memory for tpu_custom_call.1']
    #allocation7 [shape = 'u8[8192]{0}', space=vmem, size = 0x2000, scoped, tag = 'output window, operand 0']
    %7 = vsyncpa [#allocation3], 0
    %s8 = scalar_lea.sflag [#allocation3], 1
    %9 = vsyncpa %s8, 0
    %10 = vsyncpa [#allocation6], 0
    %s11 = scalar_lea.sflag [#allocation6], 1
    %12 = vsyncpa %s11, 0
    %13 = vsyncpa [#allocation4], 0
    %s14 = scalar_lea.sflag [#allocation4], 1
    %15 = vsyncpa %s14, 0
    loop: start=0, step=1, limit=4
    $region2: #{tpu_custom_call.1} parent=1 // loop_pre_header
      _
    $region3: #{tpu_custom_call.1} parent=1 // loop_header
      %s17 = sphi 0, %s21
      %p18 = scmp.ge.s32.totalorder %s17, 4
      %s24 = sphi 0, %s36
      %s25 = sphi 0, %s32
      %s26 = sphi 0, %s24
      %s27 = sphi 0, %s25
      %s28 = sphi 0, %s26
      %s29 = sphi 0, %s27
      %s41 = sphi 0, %s43
      %s44 = sphi 0, %s41
      %s45 = sphi 0, %s44
      %s61 = sphi 0, %s45
      %s69 = sphi 0, %s71
      %s72 = sphi 0, %s69
      %s73 = sphi 0, %s72
      %s89 = sphi 0, %s73
      %s97 = sphi 0, %s99
      %s100 = sphi 0, %s97
      %s101 = sphi 0, %s100
      %s117 = sphi 0, %s101
    $region4: #{tpu_custom_call.1} parent=1 // loop_header_branch
      %20 = sbr.rel (%p18) target = $region8
    $region5: #{tpu_custom_call.1} parent=1 // loop_body
      %s22 = ssub.s32 %s17, 1
      %s23 = ssub.s32 %s17, 2
      %s30 = sadd.s32 1, %s25
      %p31 = scmp.ge.s32.totalorder %s30, 1
      %s32 = scalar_select %p31, 0, %s30
      %s33 = sadd.s32 1, %s24
      %s34 = scalar_select %p31, %s33, %s24
      %p35 = scmp.ge.s32.totalorder %s34, 2
      %s36 = scalar_select %p35, 0, %s34
      %s37 = ssub.s32 %s24, %s36
      %s38 = ssub.s32 %s25, %s32
      %s39 = sor.u32 %s37, %s38
      %p40 = scmp.eq.s32.totalorder %s39, 0
      %s42 = sadd.s32 %s41, 1
      %s43 = scalar_select %p40, %s41, %s42
      %p46 = pneg %p40
      %p47 = scmp.eq.s32.totalorder %s17, 1
      %p48 = por %p46, %p47
      %p49 = scmp.ne.s32.totalorder %s41, %s44
      %p50 = scmp.eq.s32.totalorder %s17, 0
      %p51 = por %p49, %p50
      %p52 = scmp.ne.s32.totalorder %s41, %s44
      %p53 = scmp.eq.s32.totalorder %s22, 1
      %p54 = por %p52, %p53
      %p55 = scmp.ne.s32.totalorder %s44, %s45
      %p56 = scmp.eq.s32.totalorder %s22, 0
      %p57 = por %p55, %p56
      %p58 = scmp.ne.s32.totalorder %s44, %s45
      %p59 = scmp.eq.s32.totalorder %s23, 1
      %p60 = por %p58, %p59
      %p62 = scmp.ne.s32.totalorder %s45, %s61
      %p63 = scmp.eq.s32.totalorder %s23, 0
      %p64 = por %p62, %p63
      %s65 = ssub.s32 %s24, %s36
      %s66 = ssub.s32 %s25, %s32
      %s67 = sor.u32 %s65, %s66
      %p68 = scmp.eq.s32.totalorder %s67, 0
      %s70 = sadd.s32 %s69, 1
      %s71 = scalar_select %p68, %s69, %s70
      %p74 = pneg %p68
      %p75 = scmp.eq.s32.totalorder %s17, 1
      %p76 = por %p74, %p75
      %p77 = scmp.ne.s32.totalorder %s69, %s72
      %p78 = scmp.eq.s32.totalorder %s17, 0
      %p79 = por %p77, %p78
      %p80 = scmp.ne.s32.totalorder %s69, %s72
      %p81 = scmp.eq.s32.totalorder %s22, 1
      %p82 = por %p80, %p81
      %p83 = scmp.ne.s32.totalorder %s72, %s73
      %p84 = scmp.eq.s32.totalorder %s22, 0
      %p85 = por %p83, %p84
      %p86 = scmp.ne.s32.totalorder %s72, %s73
      %p87 = scmp.eq.s32.totalorder %s23, 1
      %p88 = por %p86, %p87
      %p90 = scmp.ne.s32.totalorder %s73, %s89
      %p91 = scmp.eq.s32.totalorder %s23, 0
      %p92 = por %p90, %p91
      %s93 = ssub.s32 %s24, %s36
      %s94 = ssub.s32 %s25, %s32
      %s95 = sor.u32 %s93, %s94
      %p96 = scmp.eq.s32.totalorder %s95, 0
      %s98 = sadd.s32 %s97, 1
      %s99 = scalar_select %p96, %s97, %s98
      %p102 = pneg %p96
      %p103 = scmp.eq.s32.totalorder %s17, 1
      %p104 = por %p102, %p103
      %p105 = scmp.ne.s32.totalorder %s97, %s100
      %p106 = scmp.eq.s32.totalorder %s17, 0
      %p107 = por %p105, %p106
      %p108 = scmp.ne.s32.totalorder %s97, %s100
      %p109 = scmp.eq.s32.totalorder %s22, 1
      %p110 = por %p108, %p109
      %p111 = scmp.ne.s32.totalorder %s100, %s101
      %p112 = scmp.eq.s32.totalorder %s22, 0
      %p113 = por %p111, %p112
      %p114 = scmp.ne.s32.totalorder %s100, %s101
      %p115 = scmp.eq.s32.totalorder %s23, 1
      %p116 = por %p114, %p115
      %p118 = scmp.ne.s32.totalorder %s101, %s117
      %p119 = scmp.eq.s32.totalorder %s23, 0
      %p120 = por %p118, %p119
      %p121 = scmp.le.s32.totalorder 1, %s17
      %p122 = scmp.lt.s32.totalorder %s17, 3
      %p123 = pnand %p121, %p122
      %p124 = pneg %p123
      // Predicated region
      $region9: #{tpu_custom_call.1} parent=5 // pred_check
        _
      $region10: #{tpu_custom_call.1} parent=5 // pred_check_branch
        %126 = sbr.rel (%p123) target = $region12
      $region11: #{tpu_custom_call.1} parent=5 // pred_region
        %s127 = ssub.s32 %s17, 1
      $region12: #{tpu_custom_call.1} parent=5 // pred_fallthru
        _
      %p128 = scmp.lt.s32.totalorder %s17, 2
      // Predicated region
      $region13: #{tpu_custom_call.1} parent=5 // pred_check
        %p129 = pneg %p128
      $region14: #{tpu_custom_call.1} parent=5 // pred_check_branch
        %131 = sbr.rel (%p129) target = $region16
      $region15: #{tpu_custom_call.1} parent=5 // pred_region
        // Predicated region
        $region17: #{tpu_custom_call.1} parent=15 // pred_check
          %p132 = pneg %p51
        $region18: #{tpu_custom_call.1} parent=15 // pred_check_branch
          %134 = sbr.rel (%p132) target = $region20
        $region19: #{tpu_custom_call.1} parent=15 // pred_region
          %s135 = sand.u32 %s41, 1
          %s136 = scalar_lea.sflag [#allocation3], %s135
          %s137 = sand.u32 %s41, 1
          %s138 = smul.addr %s137, 224
          %s139 = scalar_lea.vmem [#allocation2], %s138
          %s140 = smul.u32 2, %s25
          %s142 = ssub.s32 3584, 3584
          %143 = vsyncadd %s136, %s142
          %s144 = smul.addr %s140, 2
          %s145 = smul.addr %s24, 28
          %s146 = sadd.s32 %s144, %s145
          %s147 = smul.addr %s146, 128
          %s148 = scalar_lea.hbm %s0, %s147
          %s149 = sshll.u32 %s139, 4
          %s150 = int_to_ptr.vmem [resolvable:$true] %s149
          %155 = dma.hbm_to_vmem [thread:$0]  %s148, 3584, %s150, %s136, 256, 256, 16
        $region20: #{tpu_custom_call.1} parent=15 // pred_fallthru
          _
        // Predicated region
        $region21: #{tpu_custom_call.1} parent=15 // pred_check
          %p156 = pneg %p79
        $region22: #{tpu_custom_call.1} parent=15 // pred_check_branch
          %158 = sbr.rel (%p156) target = $region24
        $region23: #{tpu_custom_call.1} parent=15 // pred_region
          %s159 = sand.u32 %s69, 1
          %s160 = scalar_lea.sflag [#allocation6], %s159
          %s161 = sand.u32 %s69, 1
          %s162 = smul.addr %s161, 32
          %s163 = scalar_lea.vmem [#allocation5], %s162
          %s164 = smul.u32 2, %s25
          %s166 = ssub.s32 512, 512
          %167 = vsyncadd %s160, %s166
          %s168 = smul.addr %s164, 2
          %s169 = smul.addr %s24, 4
          %s170 = sadd.s32 %s168, %s169
          %s171 = smul.addr %s170, 128
          %s172 = scalar_lea.hbm %s1, %s171
          %s173 = sshll.u32 %s163, 4
          %s174 = int_to_ptr.vmem [resolvable:$true] %s173
          %179 = dma.hbm_to_vmem [thread:$0]  %s172, 512, %s174, %s160, 256, 256, 16
        $region24: #{tpu_custom_call.1} parent=15 // pred_fallthru
          _
      $region16: #{tpu_custom_call.1} parent=5 // pred_fallthru
        _
      %p180 = scmp.le.s32.totalorder 1, %s17
      %p181 = scmp.lt.s32.totalorder %s17, 3
      %p182 = pnand %p180, %p181
      %p183 = pneg %p182
      // Predicated region
      $region25: #{tpu_custom_call.1} parent=5 // pred_check
        _
      $region26: #{tpu_custom_call.1} parent=5 // pred_check_branch
        %185 = sbr.rel (%p182) target = $region28
      $region27: #{tpu_custom_call.1} parent=5 // pred_region
        %s186 = ssub.s32 %s17, 1
        %s187 = sand.u32 %s44, 1
        %s188 = scalar_lea.sflag [#allocation3], %s187
        %s189 = sand.u32 %s44, 1
        %s190 = smul.addr %s189, 224
        %s191 = scalar_lea.vmem [#allocation2], %s190
        // Predicated region
        $region29: #{tpu_custom_call.1} parent=27 // pred_check
          %p192 = pneg %p57
        $region30: #{tpu_custom_call.1} parent=27 // pred_check_branch
          %194 = sbr.rel (%p192) target = $region32
        $region31: #{tpu_custom_call.1} parent=27 // pred_region
          %195 = dma.done %s188, 3584
        $region32: #{tpu_custom_call.1} parent=27 // pred_fallthru
          _
        %s196 = sand.u32 %s72, 1
        %s197 = scalar_lea.sflag [#allocation6], %s196
        %s198 = sand.u32 %s72, 1
        %s199 = smul.addr %s198, 32
        %s200 = scalar_lea.vmem [#allocation5], %s199
        // Predicated region
        $region33: #{tpu_custom_call.1} parent=27 // pred_check
          %p201 = pneg %p85
        $region34: #{tpu_custom_call.1} parent=27 // pred_check_branch
          %203 = sbr.rel (%p201) target = $region36
        $region35: #{tpu_custom_call.1} parent=27 // pred_region
          %204 = dma.done %s197, 512
        $region36: #{tpu_custom_call.1} parent=27 // pred_fallthru
          _
        %s205 = sand.u32 %s44, 1
        %s206 = scalar_lea.sflag [#allocation3], %s205
        %s207 = sand.u32 %s44, 1
        %s208 = smul.addr %s207, 224
        %s209 = scalar_lea.vmem [#allocation2], %s208
        %p210 = pneg %p57
        %p211 = pneg %p54
        %s212 = sand.u32 %s72, 1
        %s213 = scalar_lea.sflag [#allocation6], %s212
        %s214 = sand.u32 %s72, 1
        %s215 = smul.addr %s214, 32
        %s216 = scalar_lea.vmem [#allocation5], %s215
        %p217 = pneg %p85
        %p218 = pneg %p82
        %p219 = pneg %p113
        %p220 = pneg %p110
        %s221 = sand.u32 %s100, 1
        %s222 = scalar_lea.sflag [#allocation4], %s221
        %s223 = sand.u32 %s100, 1
        %s224 = smul.addr %s223, 8
        %s225 = scalar_lea.vmem [#allocation7], %s224
        %s226 = smul.u32 2, %s27
        %s227 = smul.u32 2, %s27
        %s228 = smul.u32 2, %s27
        %v229 = vld [vmem:[%s191] sm:$0xff]
        %v230 = vld [vmem:[%s191 + $0x8] sm:$0xff]
        %v231 = vld [vmem:[%s191 + $0x10] sm:$0xff]
        %v232 = vld [vmem:[%s191 + $0x18] sm:$0xff]
        %v233 = vld [vmem:[%s191 + $0x20] sm:$0xff]
        %v234 = vld [vmem:[%s191 + $0x28] sm:$0xff]
        %v235 = vld [vmem:[%s191 + $0x30] sm:$0xff]
        %v236 = vld [vmem:[%s191 + $0x38] sm:$0xff]
        %v237 = vld [vmem:[%s191 + $0x40] sm:$0xff]
        %v238 = vld [vmem:[%s191 + $0x48] sm:$0xff]
        %v239 = vld [vmem:[%s191 + $0x50] sm:$0xff]
        %v240 = vld [vmem:[%s191 + $0x58] sm:$0xff]
        %v241 = vld [vmem:[%s191 + $0x60] sm:$0xff]
        %v242 = vld [vmem:[%s191 + $0x68] sm:$0xff]
        %v243 = vld [vmem:[%s191 + $0x70] sm:$0xff]
        %v244 = vld [vmem:[%s191 + $0x78] sm:$0xff]
        %v245 = vld [vmem:[%s191 + $0x80] sm:$0xff]
        %v246 = vld [vmem:[%s191 + $0x88] sm:$0xff]
        %v247 = vld [vmem:[%s191 + $0x90] sm:$0xff]
        %v248 = vld [vmem:[%s191 + $0x98] sm:$0xff]
        %v249 = vld [vmem:[%s191 + $0xa0] sm:$0xff]
        %v250 = vld [vmem:[%s191 + $0xa8] sm:$0xff]
        %v251 = vld [vmem:[%s191 + $0xb0] sm:$0xff]
        %v252 = vld [vmem:[%s191 + $0xb8] sm:$0xff]
        %v253 = vld [vmem:[%s191 + $0xc0] sm:$0xff]
        %v254 = vld [vmem:[%s191 + $0xc8] sm:$0xff]
        %v255 = vld [vmem:[%s191 + $0xd0] sm:$0xff]
        %v256 = vld [vmem:[%s191 + $0xd8] sm:$0xff]
        %v257 = vmul.f32 %v229, -0.2811341
        %v258 = vmul.f32 %v230, -0.2811341
        %v259 = vmul.f32 %v231, -0.2811341
        %v260 = vmul.f32 %v232, -0.2811341
        %v261 = vadd.f32 %v257, 0.019328002
        %v262 = vadd.f32 %v258, 0.019328002
        %v263 = vadd.f32 %v259, 0.019328002
        %v264 = vadd.f32 %v260, 0.019328002
        %v265 = vmul.f32 %v233, -0.38535437
        %v266 = vmul.f32 %v234, -0.38535437
        %v267 = vmul.f32 %v235, -0.38535437
        %v268 = vmul.f32 %v236, -0.38535437
        %v269 = vadd.f32 %v261, %v265
        %v270 = vadd.f32 %v262, %v266
        %v271 = vadd.f32 %v263, %v267
        %v272 = vadd.f32 %v264, %v268
        %v273 = vmul.f32 %v237, 0.004972145
        %v274 = vmul.f32 %v238, 0.004972145
        %v275 = vmul.f32 %v239, 0.004972145
        %v276 = vmul.f32 %v240, 0.004972145
        %v277 = vadd.f32 %v269, %v273
        %v278 = vadd.f32 %v270, %v274
        %v279 = vadd.f32 %v271, %v275
        %v280 = vadd.f32 %v272, %v276
        %v281 = vmul.f32 %v241, -0.6918115
        %v282 = vmul.f32 %v242, -0.6918115
        %v283 = vmul.f32 %v243, -0.6918115
        %v284 = vmul.f32 %v244, -0.6918115
        %v285 = vadd.f32 %v277, %v281
        %v286 = vadd.f32 %v278, %v282
        %v287 = vadd.f32 %v279, %v283
        %v288 = vadd.f32 %v280, %v284
        %v289 = vmul.f32 %v245, 1.3139256
        %v290 = vmul.f32 %v246, 1.3139256
        %v291 = vmul.f32 %v247, 1.3139256
        %v292 = vmul.f32 %v248, 1.3139256
        %v293 = vadd.f32 %v285, %v289
        %v294 = vadd.f32 %v286, %v290
        %v295 = vadd.f32 %v287, %v291
        %v296 = vadd.f32 %v288, %v292
        %v297 = vmul.f32 %v249, -0.10757875
        %v298 = vmul.f32 %v250, -0.10757875
        %v299 = vmul.f32 %v251, -0.10757875
        %v300 = vmul.f32 %v252, -0.10757875
        %v301 = vadd.f32 %v293, %v297
        %v302 = vadd.f32 %v294, %v298
        %v303 = vadd.f32 %v295, %v299
        %v304 = vadd.f32 %v296, %v300
        %v305 = vmul.f32 %v253, -0.7307176
        %v306 = vmul.f32 %v254, -0.7307176
        %v307 = vmul.f32 %v255, -0.7307176
        %v308 = vmul.f32 %v256, -0.7307176
        %v309 = vadd.f32 %v301, %v305
        %v310 = vadd.f32 %v302, %v306
        %v311 = vadd.f32 %v303, %v307
        %v312 = vadd.f32 %v304, %v308
        %vm313 = vcmp.gt.f32.partialorder %v309, 0.0
        %vm314 = vcmp.gt.f32.partialorder %v310, 0.0
        %vm315 = vcmp.gt.f32.partialorder %v311, 0.0
        %vm316 = vcmp.gt.f32.partialorder %v312, 0.0
        %v317 = vld [vmem:[%s200] sm:$0xff]
        %v318 = vld [vmem:[%s200 + $0x8] sm:$0xff]
        %v319 = vld [vmem:[%s200 + $0x10] sm:$0xff]
        %v320 = vld [vmem:[%s200 + $0x18] sm:$0xff]
        %vm321 = vcmp.gt.f32.partialorder %v317, 0.0
        %vm322 = vcmp.gt.f32.partialorder %v318, 0.0
        %vm323 = vcmp.gt.f32.partialorder %v319, 0.0
        %vm324 = vcmp.gt.f32.partialorder %v320, 0.0
        %vm325 = vmxor %vm313, %vm321
        %vm326 = vmxor %vm314, %vm322
        %vm327 = vmxor %vm315, %vm323
        %vm328 = vmxor %vm316, %vm324
        %v329 = vsel %vm325, 1, 0
        %v330 = vsel %vm326, 1, 0
        %v331 = vsel %vm327, 1, 0
        %v332 = vsel %vm328, 1, 0
        %v333 = vsel %vm321, 1, 0
        %v334 = vsel %vm322, 1, 0
        %v335 = vsel %vm323, 1, 0
        %v336 = vsel %vm324, 1, 0
        %v337 = vmul.u32 %v333, 2
        %v338 = vmul.u32 %v334, 2
        %v339 = vmul.u32 %v335, 2
        %v340 = vmul.u32 %v336, 2
        %v341 = vadd.s32 %v329, %v337
        %v342 = vadd.s32 %v330, %v338
        %v343 = vadd.s32 %v331, %v339
        %v344 = vadd.s32 %v332, %v340
        %v345 = vpack.c.b16 %v342, %v341
        %v346 = vpack.c.b8 %v345, %v345
        %v347 = vpack.c.b16 %v344, %v343
        %v348 = vpack.c.b8 %v347, %v347
        %349 = vst [vmem:[%s225] sm:$0xf] %v346
        %350 = vst [vmem:[%s225 + $0x4] sm:$0xf] %v348
        %s351 = sand.u32 %s100, 1
        %s352 = scalar_lea.sflag [#allocation4], %s351
        %s353 = sand.u32 %s100, 1
        %s354 = smul.addr %s353, 8
        %s355 = scalar_lea.vmem [#allocation7], %s354
        // Predicated region
        $region37: #{tpu_custom_call.1} parent=27 // pred_check
          %p356 = pneg %p110
        $region38: #{tpu_custom_call.1} parent=27 // pred_check_branch
          %358 = sbr.rel (%p356) target = $region40
        $region39: #{tpu_custom_call.1} parent=27 // pred_region
          %s359 = smul.u32 2, %s27
          %s361 = ssub.s32 128, 128
          %362 = vsyncadd %s352, %s361
          %s363 = smul.addr %s359, 2
          %s364 = smul.addr %s26, 4
          %s365 = sadd.s32 %s363, %s364
          %s366 = smul.addr %s365, 32
          %s367 = scalar_lea.hbm %s2, %s366
          %s368 = sshll.u32 %s355, 4
          %s369 = int_to_ptr.vmem [resolvable:$true] %s368
          %374 = dma.vmem_to_hbm [thread:$0]  %s369, 128, %s367, %s352, 64, 64, 4
        $region40: #{tpu_custom_call.1} parent=27 // pred_fallthru
          _
      $region28: #{tpu_custom_call.1} parent=5 // pred_fallthru
        _
      %p375 = scmp.le.s32.totalorder 2, %s17
      // Predicated region
      $region41: #{tpu_custom_call.1} parent=5 // pred_check
        %p376 = pneg %p375
      $region42: #{tpu_custom_call.1} parent=5 // pred_check_branch
        %378 = sbr.rel (%p376) target = $region44
      $region43: #{tpu_custom_call.1} parent=5 // pred_region
        %s379 = ssub.s32 %s17, 2
        // Predicated region
        $region45: #{tpu_custom_call.1} parent=43 // pred_check
          %p380 = pneg %p116
        $region46: #{tpu_custom_call.1} parent=43 // pred_check_branch
          %382 = sbr.rel (%p380) target = $region48
        $region47: #{tpu_custom_call.1} parent=43 // pred_region
          %s383 = sand.u32 %s101, 1
          %s384 = scalar_lea.sflag [#allocation4], %s383
          %s385 = sand.u32 %s101, 1
          %s386 = smul.addr %s385, 8
          %s387 = scalar_lea.vmem [#allocation7], %s386
          %388 = dma.done %s384, 128
        $region48: #{tpu_custom_call.1} parent=43 // pred_fallthru
          _
      $region44: #{tpu_custom_call.1} parent=5 // pred_fallthru
        _
    $region6: #{tpu_custom_call.1} parent=1 // loop_footer
      %s21 = sadd.s32 1, %s17
    $region7: #{tpu_custom_call.1} parent=1 // loop_footer_branch
      %16 = sbr.rel target = $region3
    $region8: #{tpu_custom_call.1} parent=1 // loop_exit
      _
    %389 = vsyncpa [#allocation3], 1
    %s390 = scalar_lea.sflag [#allocation3], 1
    %391 = vsyncpa %s390, 1
    %392 = vsyncpa [#allocation6], 1
    %s393 = scalar_lea.sflag [#allocation6], 1
    %394 = vsyncpa %s393, 1
    %395 = vsyncpa [#allocation4], 1
    %s396 = scalar_lea.sflag [#allocation4], 1
    %397 = vsyncpa %s396, 1

</llo_original>
